<compile_context>
chip_gen: v5e
topology: v5e:2x2
jax: 0.10.0
libtpu: 0.0.40
codegen_flags: <defaults>
</compile_context>

<pallas_src>
import numpy as np
import jax
import jax.numpy as jnp
from jax.experimental import pallas as pl
from jax.experimental.pallas import tpu as pltpu

_LANE = 128
# VMEM budget for the double-buffered streamed operands (x, a, q).  Their
# narrow feature dims lane-pad to 128 in VMEM, so each row costs
# 128*itemsize bytes per buffer.  40 MiB keeps total usage (plus resident
# weights and compiler scratch) under v7x's 64 MiB physical VMEM.
_ACT_VMEM_BUDGET = 40 * 1024 * 1024


def _round_up(n, m):
    return ((n + m - 1) // m) * m


def _resident_kwargs():
    """Single-buffer the VMEM-resident weights/biases when supported.

    Their index_map is constant, so the second pipeline buffer is dead VMEM;
    pl.Buffered(1) frees it (matters at large fc1/fc2).  Falls back silently
    on JAX versions whose BlockSpec lacks pipeline_mode.
    """
    if not hasattr(pl, "Buffered"):
        return {}
    try:
        pl.BlockSpec((8, _LANE), lambda i: (0, 0), pipeline_mode=pl.Buffered(1))
    except TypeError:
        return {}
    return {"pipeline_mode": pl.Buffered(1)}


_RESIDENT = _resident_kwargs()


def _critic_kernel(x_ref, a_ref, w1_ref, b1_ref, w2x_ref, w2a_ref, b2_ref,
                   w3r_ref, b3_ref, q_ref):
    # Streamed activations may arrive in bf16; upcast once on the VPU (no-op
    # for f32).  All matmul accumulation and bias/ReLU math stays f32.
    x = x_ref[...].astype(jnp.float32)
    a = a_ref[...].astype(jnp.float32)

    # Layer 1: Linear(state -> fc1) + ReLU.
    h1 = jnp.dot(x, w1_ref[...], preferred_element_type=jnp.float32)
    h1 = jnp.maximum(h1 + b1_ref[...], 0.0)

    # Layer 2: Linear(fc1 + action -> fc2) + ReLU, concat eliminated:
    #   cat([h1, a]) @ W2 == h1 @ W2x + a @ W2a   (exact).
    h2 = (jnp.dot(h1, w2x_ref[...], preferred_element_type=jnp.float32)
          + jnp.dot(a, w2a_ref[...], preferred_element_type=jnp.float32))
    h2 = jnp.maximum(h2 + b2_ref[...], 0.0)

    # Layer 3: Linear(fc2 -> 1) as VPU broadcast-mul + lane reduction over fc2
    # (no dot_general on h2's lane dim -> no hidden XLU transpose).
    q = jnp.sum(h2 * w3r_ref[...], axis=-1, keepdims=True) + b3_ref[0, 0]
    q_ref[...] = q.astype(q_ref.dtype)


def _choose_tile(batch, block_batch, x_itemsize, a_itemsize):
    # Per-row VMEM bytes of the double-buffered x, a and q tiles (lane-padded).
    per_row = 2 * _LANE * (x_itemsize + a_itemsize + 4)
    tm_cap = max(_LANE, (_ACT_VMEM_BUDGET // per_row) // _LANE * _LANE)
    if batch > block_batch:
        tm = _round_up(block_batch, _LANE)
    elif batch >= 1024:
        # Split into >= 2 tiles so the "parallel" axis can feed both v7x TCs.
        tm = _round_up(pl.cdiv(batch, 2), _LANE)
    else:
        tm = batch  # single tile == full array; no alignment constraint
    return max(1, min(tm, tm_cap, batch))


def ddpg_critic_forward(x, a, params, *, block_batch=4096):
    """Fused DDPG-critic forward pass on TPU via Pallas (batch-tiled, pipelined).

    x: (batch, state_size), a: (batch, action_size) in f32 or bf16 (streamed
    as stored; upcast in-kernel).  Returns q: (batch, 1) f32.
    """
    w1, b1, w2x, w2a, b2, w3, b3 = params
    batch, state_size = x.shape
    action_size = a.shape[1]
    fc1 = w1.shape[1]
    fc2 = w2x.shape[1]

    w3_row = w3.reshape(1, fc2)                 # (fc2, 1) -> (1, fc2) row

    xi = jnp.dtype(x.dtype).itemsize
    ai = jnp.dtype(a.dtype).itemsize
    tm = _choose_tile(batch, block_batch, xi, ai)
    n_tiles = pl.cdiv(batch, tm)

    # VMEM: double-buffered activation tiles (lane-padded to 128) + resident
    # params; add margin, floor at 32 MiB, cap below v7x's 64 MiB physical.
    act_vmem = 2 * tm * _LANE * (xi + ai + 4)
    w_vmem = 4 * (_round_up(fc1, _LANE) * (_round_up(state_size, 8) + 8)
                  + _round_up(fc2, _LANE) * (_round_up(fc1, 8)
                                             + _round_up(action_size, 8) + 16))
    vmem_limit = int(min(max(act_vmem + w_vmem + (8 << 20), 32 << 20), 56 << 20))

    flops = 2 * batch * (state_size * fc1 + (fc1 + action_size) * fc2 + fc2)
    bytes_accessed = (batch * (state_size * xi + action_size * ai)        # x, a
                      + 4 * (state_size * fc1 + (fc1 + action_size) * fc2
                             + fc1 + fc2 + fc2 + 1)                       # params
                      + batch * 4)                                        # q

    grid_spec = pltpu.PrefetchScalarGridSpec(
        num_scalar_prefetch=0,
        grid=(n_tiles,),
        in_specs=[
            pl.BlockSpec((tm, state_size), lambda i: (i, 0)),    # x tile (streamed)
            pl.BlockSpec((tm, action_size), lambda i: (i, 0)),   # a tile (streamed)
            pl.BlockSpec((state_size, fc1), lambda i: (0, 0), **_RESIDENT),   # W1
            pl.BlockSpec((1, fc1), lambda i: (0, 0), **_RESIDENT),            # b1
            pl.BlockSpec((fc1, fc2), lambda i: (0, 0), **_RESIDENT),          # W2x
            pl.BlockSpec((action_size, fc2), lambda i: (0, 0), **_RESIDENT),  # W2a
            pl.BlockSpec((1, fc2), lambda i: (0, 0), **_RESIDENT),            # b2
            pl.BlockSpec((1, fc2), lambda i: (0, 0), **_RESIDENT),            # W3 row
            pl.BlockSpec((1, 1), lambda i: (0, 0),
                         memory_space=pltpu.MemorySpace.SMEM),   # b3 scalar
        ],
        out_specs=pl.BlockSpec((tm, 1), lambda i: (i, 0)),       # q tile
    )

    return pl.pallas_call(
        _critic_kernel,
        out_shape=jax.ShapeDtypeStruct((batch, 1), jnp.float32),
        grid_spec=grid_spec,
        compiler_params=pltpu.CompilerParams(
            dimension_semantics=("parallel",),      # batch axis -> both TCs on v7x
            vmem_limit_bytes=vmem_limit),
        cost_estimate=pl.CostEstimate(
            flops=flops, transcendentals=0, bytes_accessed=bytes_accessed),
    )(x, a, w1, b1, w2x, w2a, b2, w3_row, b3)


def init_params(key, state_size, action_size, fc1_units, fc2_units):
    """Deterministic PyTorch-style (uniform +/- 1/sqrt(fan_in)) init.

    Weights are stored transposed, i.e. (in_features, out_features), and the
    layer-2 weight is pre-split into its h1 part and its action part.
    """
    k1, k2, k3, k4, k5, k6 = jax.random.split(key, 6)

    def uni(k, shape, fan_in):
        bound = 1.0 / np.sqrt(fan_in)
        return jax.random.uniform(k, shape, jnp.float32, -bound, bound)

    w1 = uni(k1, (state_size, fc1_units), state_size)
    b1 = uni(k2, (1, fc1_units), state_size)

    fan2 = fc1_units + action_size
    w2_full = uni(k3, (fan2, fc2_units), fan2)
    w2x, w2a = w2_full[:fc1_units], w2_full[fc1_units:]
    b2 = uni(k4, (1, fc2_units), fan2)

    w3 = uni(k5, (fc2_units, 1), fc2_units)
    b3 = uni(k6, (1, 1), fc2_units)
    return (w1, b1, w2x, w2a, b2, w3, b3)


def _reference_forward(x, a, params):
    """Pure-JAX reference matching the PyTorch module exactly (uses concat)."""
    w1, b1, w2x, w2a, b2, w3, b3 = params
    h1 = jnp.maximum(x @ w1 + b1, 0.0)
    cat = jnp.concatenate([h1, a], axis=1)
    w2 = jnp.concatenate([w2x, w2a], axis=0)
    h2 = jnp.maximum(cat @ w2 + b2, 0.0)
    return h2 @ w3 + b3


if __name__ == "__main__":
    # Small shapes consistent with the module's forward.
    batch = 8
    state_size = 16
    action_size = 4
    fc1_units = 32
    fc2_units = 32

    key = jax.random.PRNGKey(0)
    kx, ka, kp = jax.random.split(key, 3)

    x = jax.random.normal(kx, (batch, state_size), jnp.float32)
    a = jax.random.normal(ka, (batch, action_size), jnp.float32)
    params = init_params(kp, state_size, action_size, fc1_units, fc2_units)

    q_ref = _reference_forward(x, a, params)

    # Single-tile f32 path.
    q = jax.block_until_ready(ddpg_critic_forward(x, a, params))
    np.testing.assert_allclose(np.asarray(q), np.asarray(q_ref),
                               rtol=1e-5, atol=1e-5)

    # Multi-tile pipelined path with a ragged last block (no wrapper pad).
    kx2, ka2 = jax.random.split(jax.random.PRNGKey(1), 2)
    xb = jax.random.normal(kx2, (300, state_size), jnp.float32)
    ab = jax.random.normal(ka2, (300, action_size), jnp.float32)
    qb = jax.block_until_ready(
        ddpg_critic_forward(xb, ab, params, block_batch=128))
    np.testing.assert_allclose(np.asarray(qb),
                               np.asarray(_reference_forward(xb, ab, params)),
                               rtol=1e-5, atol=1e-5)

    # Moderate batch: split into >= 2 tiles so both v7x TensorCores get work.
    kx3, ka3 = jax.random.split(jax.random.PRNGKey(2), 2)
    xc = jax.random.normal(kx3, (1280, state_size), jnp.float32)
    ac = jax.random.normal(ka3, (1280, action_size), jnp.float32)
    qc = jax.block_until_ready(ddpg_critic_forward(xc, ac, params))
    np.testing.assert_allclose(np.asarray(qc),
                               np.asarray(_reference_forward(xc, ac, params)),
                               rtol=1e-5, atol=1e-5)

    # Producer-supplied bf16 activations: streamed as-is (no wrapper cast);
    # weights and all intermediates stay f32 inside the kernel.
    q_bf16 = jax.block_until_ready(
        ddpg_critic_forward(x.astype(jnp.bfloat16), a.astype(jnp.bfloat16),
                            params))
    np.testing.assert_allclose(np.asarray(q_bf16), np.asarray(q_ref),
                               rtol=5e-2, atol=5e-2)

    print("KERNEL_OK")
</pallas_src>

<mosaic_0001>
module attributes {stable_mosaic.version = 11 : i64} {
  func.func @_critic_kernel(%arg0: i32, %arg1: memref<8x16xf32, #tpu.memory_space<vmem>>, %arg2: memref<8x4xf32, #tpu.memory_space<vmem>>, %arg3: memref<16x32xf32, #tpu.memory_space<vmem>>, %arg4: memref<1x32xf32, #tpu.memory_space<vmem>>, %arg5: memref<32x32xf32, #tpu.memory_space<vmem>>, %arg6: memref<4x32xf32, #tpu.memory_space<vmem>>, %arg7: memref<1x32xf32, #tpu.memory_space<vmem>>, %arg8: memref<1x32xf32, #tpu.memory_space<vmem>>, %arg9: memref<1x1xf32, #tpu.memory_space<smem>>, %arg10: memref<8x1xf32, #tpu.memory_space<vmem>>) attributes {dimension_semantics = [#tpu.dimension_semantics<parallel>], iteration_bounds = array<i64: 1>, scalar_prefetch = 0 : i64, scratch_operands = 0 : i64, tpu.core_type = #tpu.core_type<tc>, window_params = [{transform_indices = @transform_0, window_bounds = array<i64: 8, 16>}, {transform_indices = @transform_1, window_bounds = array<i64: 8, 4>}, {pipeline_mode = #tpu.pipeline_mode<synchronous>, transform_indices = @transform_2, window_bounds = array<i64: 16, 32>}, {pipeline_mode = #tpu.pipeline_mode<synchronous>, transform_indices = @transform_3, window_bounds = array<i64: 1, 32>}, {pipeline_mode = #tpu.pipeline_mode<synchronous>, transform_indices = @transform_4, window_bounds = array<i64: 32, 32>}, {pipeline_mode = #tpu.pipeline_mode<synchronous>, transform_indices = @transform_5, window_bounds = array<i64: 4, 32>}, {pipeline_mode = #tpu.pipeline_mode<synchronous>, transform_indices = @transform_6, window_bounds = array<i64: 1, 32>}, {pipeline_mode = #tpu.pipeline_mode<synchronous>, transform_indices = @transform_7, window_bounds = array<i64: 1, 32>}, {transform_indices = @transform_8, window_bounds = array<i64: 1, 1>}, {transform_indices = @transform_9, window_bounds = array<i64: 8, 1>}]} {
    %c0 = arith.constant 0 : index
    %c0_0 = arith.constant 0 : index
    %0 = vector.load %arg1[%c0, %c0_0] : memref<8x16xf32, #tpu.memory_space<vmem>>, vector<8x16xf32>
    %c0_1 = arith.constant 0 : index
    %c0_2 = arith.constant 0 : index
    %1 = vector.load %arg2[%c0_1, %c0_2] : memref<8x4xf32, #tpu.memory_space<vmem>>, vector<8x4xf32>
    %c0_3 = arith.constant 0 : index
    %c0_4 = arith.constant 0 : index
    %2 = vector.load %arg3[%c0_3, %c0_4] : memref<16x32xf32, #tpu.memory_space<vmem>>, vector<16x32xf32>
    %cst = arith.constant dense<0.000000e+00> : vector<8x32xf32>
    %3 = tpu.matmul %0, %2, %cst {dimension_numbers = #tpu.dot_dimension_numbers<[1], [0], [0], [1], [0, 0, 1, 1], [], []>} : vector<8x16xf32>, vector<16x32xf32>, vector<8x32xf32> -> vector<8x32xf32>
    %c0_5 = arith.constant 0 : index
    %c0_6 = arith.constant 0 : index
    %4 = vector.load %arg4[%c0_5, %c0_6] : memref<1x32xf32, #tpu.memory_space<vmem>>, vector<1x32xf32>
    %5 = vector.broadcast %4 : vector<1x32xf32> to vector<8x32xf32>
    %6 = arith.addf %3, %5 : vector<8x32xf32>
    %cst_7 = arith.constant 0.000000e+00 : f32
    %7 = vector.broadcast %cst_7 : f32 to vector<8x32xf32>
    %8 = arith.maximumf %6, %7 : vector<8x32xf32>
    %c0_8 = arith.constant 0 : index
    %c0_9 = arith.constant 0 : index
    %9 = vector.load %arg5[%c0_8, %c0_9] : memref<32x32xf32, #tpu.memory_space<vmem>>, vector<32x32xf32>
    %cst_10 = arith.constant dense<0.000000e+00> : vector<8x32xf32>
    %10 = tpu.matmul %8, %9, %cst_10 {dimension_numbers = #tpu.dot_dimension_numbers<[1], [0], [0], [1], [0, 0, 1, 1], [], []>} : vector<8x32xf32>, vector<32x32xf32>, vector<8x32xf32> -> vector<8x32xf32>
    %c0_11 = arith.constant 0 : index
    %c0_12 = arith.constant 0 : index
    %11 = vector.load %arg6[%c0_11, %c0_12] : memref<4x32xf32, #tpu.memory_space<vmem>>, vector<4x32xf32>
    %cst_13 = arith.constant dense<0.000000e+00> : vector<8x32xf32>
    %12 = tpu.matmul %1, %11, %cst_13 {dimension_numbers = #tpu.dot_dimension_numbers<[1], [0], [0], [1], [0, 0, 1, 1], [], []>} : vector<8x4xf32>, vector<4x32xf32>, vector<8x32xf32> -> vector<8x32xf32>
    %13 = arith.addf %10, %12 : vector<8x32xf32>
    %c0_14 = arith.constant 0 : index
    %c0_15 = arith.constant 0 : index
    %14 = vector.load %arg7[%c0_14, %c0_15] : memref<1x32xf32, #tpu.memory_space<vmem>>, vector<1x32xf32>
    %15 = vector.broadcast %14 : vector<1x32xf32> to vector<8x32xf32>
    %16 = arith.addf %13, %15 : vector<8x32xf32>
    %cst_16 = arith.constant 0.000000e+00 : f32
    %17 = vector.broadcast %cst_16 : f32 to vector<8x32xf32>
    %18 = arith.maximumf %16, %17 : vector<8x32xf32>
    %c0_17 = arith.constant 0 : index
    %c0_18 = arith.constant 0 : index
    %19 = vector.load %arg8[%c0_17, %c0_18] : memref<1x32xf32, #tpu.memory_space<vmem>>, vector<1x32xf32>
    %20 = vector.broadcast %19 : vector<1x32xf32> to vector<8x32xf32>
    %21 = arith.mulf %18, %20 : vector<8x32xf32>
    %cst_19 = arith.constant dense<0.000000e+00> : vector<8xf32>
    %22 = vector.multi_reduction <add>, %21, %cst_19 [1] : vector<8x32xf32> to vector<8xf32>
    %23 = vector.shape_cast %22 : vector<8xf32> to vector<8x1xf32>
    %c0_20 = arith.constant 0 : index
    %c0_21 = arith.constant 0 : index
    %24 = memref.load %arg9[%c0_20, %c0_21] : memref<1x1xf32, #tpu.memory_space<smem>>
    %25 = vector.broadcast %24 : f32 to vector<8x1xf32>
    %26 = arith.addf %23, %25 : vector<8x1xf32>
    %c0_22 = arith.constant 0 : index
    %c0_23 = arith.constant 0 : index
    %27 = vector.load %arg10[%c0_22, %c0_23] : memref<8x1xf32, #tpu.memory_space<vmem>>, vector<8x1xf32>
    tpu.vector_store %arg10[%c0_22, %c0_23], %26 {strides = array<i32>} : memref<8x1xf32, #tpu.memory_space<vmem>>, vector<8x1xf32>,
    return
  }
  func.func @transform_0(%arg0: i32) -> (i32, i32) {
    %c0_i32 = arith.constant 0 : i32
    %c0_i32_0 = arith.constant 0 : i32
    return %arg0, %c0_i32 : i32, i32
  }
  func.func @transform_1(%arg0: i32) -> (i32, i32) {
    %c0_i32 = arith.constant 0 : i32
    %c0_i32_0 = arith.constant 0 : i32
    return %arg0, %c0_i32 : i32, i32
  }
  func.func @transform_2(%arg0: i32) -> (i32, i32) {
    %c0_i32 = arith.constant 0 : i32
    %c0_i32_0 = arith.constant 0 : i32
    %c0_i32_1 = arith.constant 0 : i32
    return %c0_i32, %c0_i32_0 : i32, i32
  }
  func.func @transform_3(%arg0: i32) -> (i32, i32) {
    %c0_i32 = arith.constant 0 : i32
    %c0_i32_0 = arith.constant 0 : i32
    %c0_i32_1 = arith.constant 0 : i32
    return %c0_i32, %c0_i32_0 : i32, i32
  }
  func.func @transform_4(%arg0: i32) -> (i32, i32) {
    %c0_i32 = arith.constant 0 : i32
    %c0_i32_0 = arith.constant 0 : i32
    %c0_i32_1 = arith.constant 0 : i32
    return %c0_i32, %c0_i32_0 : i32, i32
  }
  func.func @transform_5(%arg0: i32) -> (i32, i32) {
    %c0_i32 = arith.constant 0 : i32
    %c0_i32_0 = arith.constant 0 : i32
    %c0_i32_1 = arith.constant 0 : i32
    return %c0_i32, %c0_i32_0 : i32, i32
  }
  func.func @transform_6(%arg0: i32) -> (i32, i32) {
    %c0_i32 = arith.constant 0 : i32
    %c0_i32_0 = arith.constant 0 : i32
    %c0_i32_1 = arith.constant 0 : i32
    return %c0_i32, %c0_i32_0 : i32, i32
  }
  func.func @transform_7(%arg0: i32) -> (i32, i32) {
    %c0_i32 = arith.constant 0 : i32
    %c0_i32_0 = arith.constant 0 : i32
    %c0_i32_1 = arith.constant 0 : i32
    return %c0_i32, %c0_i32_0 : i32, i32
  }
  func.func @transform_8(%arg0: i32) -> (i32, i32) {
    %c0_i32 = arith.constant 0 : i32
    %c0_i32_0 = arith.constant 0 : i32
    %c0_i32_1 = arith.constant 0 : i32
    return %c0_i32, %c0_i32_0 : i32, i32
  }
  func.func @transform_9(%arg0: i32) -> (i32, i32) {
    %c0_i32 = arith.constant 0 : i32
    %c0_i32_0 = arith.constant 0 : i32
    return %arg0, %c0_i32 : i32, i32
  }
}

</mosaic_0001>

<llo_original>
// kernel: tpu_custom_call.1
$region0: #{tpu_custom_call.1}
  #allocation0 [shape = 'u32[]', space=smem, size = 0x4, offset = 0x4, fixed_abs, tag = 'smem constant byte address 0x4 - core index']
  #allocation1 [shape = 'u32[72,128]{1,0:T(1,128)}', space=vmem, size = 0x9000, scoped, tag = 'internal scratch']
  #allocation2 [shape = 'f32[1,1]{1,0:T(1,128)S(6)}', space=smem, size = 0x200, scoped, tag = 'scoped memory for tpu_custom_call.1']
  %s0 = inlined_call_operand.vmem [shape: f32[8,16], index: 0, kind: input, shape index: {}]
  %s1 = inlined_call_operand.vmem [shape: f32[8,4], index: 1, kind: input, shape index: {}]
  %s2 = inlined_call_operand.hbm [shape: f32[16,32], index: 2, kind: input, shape index: {}]
  %s3 = inlined_call_operand.vmem [shape: f32[1,32], index: 3, kind: input, shape index: {}]
  %s4 = inlined_call_operand.hbm [shape: f32[32,32], index: 4, kind: input, shape index: {}]
  %s5 = inlined_call_operand.vmem [shape: f32[4,32], index: 5, kind: input, shape index: {}]
  %s6 = inlined_call_operand.vmem [shape: f32[1,32], index: 6, kind: input, shape index: {}]
  %s7 = inlined_call_operand.vmem [shape: f32[1,32], index: 7, kind: input, shape index: {}]
  %s8 = inlined_call_operand.<no memory space> [shape: f32[1,1], index: 8, kind: input, shape index: {}]
  %s9 = inlined_call_operand.vmem [shape: f32[8,1], index: 9, kind: output, shape index: {}]
  %s10 = sld [smem:[#allocation0]]
  $region54: #{tpu_custom_call.1} parent=0
    _
  %s12 = ssub.s32 1, %s10
  %s13 = scalar_select 0, %s12, %s10
  %14 = sst [smem:[#allocation2]] %s8
  $region1: #{tpu_custom_call.1} parent=0
    #allocation3 [shape = 'u8[8192]{0}', space=vmem, size = 0x2000, scoped, tag = 'input window, operand 2, single buffered']
    #allocation4 [shape = 's32[1]{0}', space=sflag, size = 0x4, scoped, tag = 'scoped memory for tpu_custom_call.1']
    #allocation5 [shape = 'u8[16384]{0}', space=vmem, size = 0x4000, scoped, tag = 'input window, operand 4, single buffered']
    #allocation6 [shape = 's32[1]{0}', space=sflag, size = 0x4, scoped, tag = 'scoped memory for tpu_custom_call.1']
    %15 = vsyncpa [#allocation4], 0
    %16 = vsyncpa [#allocation6], 0
    // Predicated region
    $region2: #{tpu_custom_call.1} parent=1 // pred_check
      _
    $region3: #{tpu_custom_call.1} parent=1 // pred_check_branch
      %18 = sbr.rel (0) target = $region5
    $region4: #{tpu_custom_call.1} parent=1 // pred_region
      _
    $region5: #{tpu_custom_call.1} parent=1 // pred_fallthru
      _
    // Predicated region
    $region6: #{tpu_custom_call.1} parent=1 // pred_check
      _
    $region7: #{tpu_custom_call.1} parent=1 // pred_check_branch
      %20 = sbr.rel (0) target = $region9
    $region8: #{tpu_custom_call.1} parent=1 // pred_region
      _
    $region9: #{tpu_custom_call.1} parent=1 // pred_fallthru
      _
    // Predicated region
    $region10: #{tpu_custom_call.1} parent=1 // pred_check
      _
    $region11: #{tpu_custom_call.1} parent=1 // pred_check_branch
      %22 = sbr.rel (0) target = $region13
    $region12: #{tpu_custom_call.1} parent=1 // pred_region
      %24 = vsyncadd [#allocation4], 0
      %s25 = sshll.u32 %s2, 4
      %s26 = int_to_ptr.hbm [resolvable:$true] %s25
      %s27 = sshll.u32 [#allocation3], 4
      %s28 = int_to_ptr.vmem [resolvable:$true] %s27
      %33 = dma.hbm_to_vmem [thread:$0]  %s26, 256, %s28, [#allocation4], 128, 128, 8
    $region13: #{tpu_custom_call.1} parent=1 // pred_fallthru
      _
    // Predicated region
    $region14: #{tpu_custom_call.1} parent=1 // pred_check
      _
    $region15: #{tpu_custom_call.1} parent=1 // pred_check_branch
      %35 = sbr.rel (0) target = $region17
    $region16: #{tpu_custom_call.1} parent=1 // pred_region
      _
    $region17: #{tpu_custom_call.1} parent=1 // pred_fallthru
      _
    // Predicated region
    $region18: #{tpu_custom_call.1} parent=1 // pred_check
      _
    $region19: #{tpu_custom_call.1} parent=1 // pred_check_branch
      %37 = sbr.rel (0) target = $region21
    $region20: #{tpu_custom_call.1} parent=1 // pred_region
      %39 = vsyncadd [#allocation6], 0
      %s40 = sshll.u32 %s4, 4
      %s41 = int_to_ptr.hbm [resolvable:$true] %s40
      %s42 = sshll.u32 [#allocation5], 4
      %s43 = int_to_ptr.vmem [resolvable:$true] %s42
      %48 = dma.hbm_to_vmem [thread:$0]  %s41, 512, %s43, [#allocation6], 128, 128, 8
    $region21: #{tpu_custom_call.1} parent=1 // pred_fallthru
      _
    // Predicated region
    $region22: #{tpu_custom_call.1} parent=1 // pred_check
      _
    $region23: #{tpu_custom_call.1} parent=1 // pred_check_branch
      %50 = sbr.rel (0) target = $region25
    $region24: #{tpu_custom_call.1} parent=1 // pred_region
      _
    $region25: #{tpu_custom_call.1} parent=1 // pred_fallthru
      _
    // Predicated region
    $region26: #{tpu_custom_call.1} parent=1 // pred_check
      _
    $region27: #{tpu_custom_call.1} parent=1 // pred_check_branch
      %52 = sbr.rel (0) target = $region29
    $region28: #{tpu_custom_call.1} parent=1 // pred_region
      _
    $region29: #{tpu_custom_call.1} parent=1 // pred_fallthru
      _
    // Predicated region
    $region30: #{tpu_custom_call.1} parent=1 // pred_check
      _
    $region31: #{tpu_custom_call.1} parent=1 // pred_check_branch
      %54 = sbr.rel (0) target = $region33
    $region32: #{tpu_custom_call.1} parent=1 // pred_region
      _
    $region33: #{tpu_custom_call.1} parent=1 // pred_fallthru
      _
    // Predicated region
    $region34: #{tpu_custom_call.1} parent=1 // pred_check
      _
    $region35: #{tpu_custom_call.1} parent=1 // pred_check_branch
      %56 = sbr.rel (0) target = $region37
    $region36: #{tpu_custom_call.1} parent=1 // pred_region
      _
    $region37: #{tpu_custom_call.1} parent=1 // pred_fallthru
      _
    // Predicated region
    $region38: #{tpu_custom_call.1} parent=1 // pred_check
      _
    $region39: #{tpu_custom_call.1} parent=1 // pred_check_branch
      %58 = sbr.rel (0) target = $region41
    $region40: #{tpu_custom_call.1} parent=1 // pred_region
      %60 = dma.done [#allocation4], 256
    $region41: #{tpu_custom_call.1} parent=1 // pred_fallthru
      _
    // Predicated region
    $region42: #{tpu_custom_call.1} parent=1 // pred_check
      _
    $region43: #{tpu_custom_call.1} parent=1 // pred_check_branch
      %62 = sbr.rel (0) target = $region45
    $region44: #{tpu_custom_call.1} parent=1 // pred_region
      %64 = dma.done [#allocation6], 512
    $region45: #{tpu_custom_call.1} parent=1 // pred_fallthru
      _
    %v65 = vld [vmem:[%s0] sm:$0xff]
    %v66 = vld [vmem:[%s1] sm:$0xff]
    %v67 = vld [vmem:[#allocation3] sm:$0xff]
    %v68 = vld [vmem:[#allocation3 + $0x8] sm:$0xff]
    %v69 = vld [vmem:[%s3] sm:$0x1]
    %v71 = vperm.slane %v69, 0
    %vm73 = vcmask 130048
    %v75 = vsel %vm73, %v65, 0
    %77 = vmatpush.msra.mxu0 0.0
    %78 = vmatpush.msra.mxu0 0.0
    %79 = vmatpush.msra.mxu0 0.0
    %80 = vmatpush.msra.mxu0 0.0
    %81 = vmatpush.msra.mxu0 0.0
    %82 = vmatpush.msra.mxu0 0.0
    %83 = vmatpush.msra.mxu0 0.0
    %84 = vmatpush.msra.mxu0 0.0
    %85 = vmatpush.msra.mxu0 0.0
    %86 = vmatpush.msra.mxu0 0.0
    %87 = vmatpush.msra.mxu0 0.0
    %88 = vmatpush.msra.mxu0 0.0
    %89 = vmatpush.msra.mxu0 0.0
    %90 = vmatpush.msra.mxu0 0.0
    %91 = vmatpush.msra.mxu0 %v68
    %92 = vmatpush.msra.mxu0 %v67
    %93 = vmatmul.f32.gmra.mxu0 %v75
    %v94 = vpop.f32.mrf.mxu0
    %v95 = vadd.f32 %v71, %v94
    %96 = vdwg.mxu0
    %v97 = vmax.f32 %v95, 0.0
    %v98 = vld [vmem:[#allocation5] sm:$0xff]
    %v99 = vld [vmem:[#allocation5 + $0x8] sm:$0xff]
    %v100 = vld [vmem:[#allocation5 + $0x10] sm:$0xff]
    %v101 = vld [vmem:[#allocation5 + $0x18] sm:$0xff]
    %v102 = vld [vmem:[%s5] sm:$0xf]
    %vm103 = vcmask 31744
    %v105 = vsel %vm103, %v66, 0
    %vm107 = vcmask 1043456
    %v109 = vsel %vm107, %v102, 0
    %111 = vmatpush.msra.mxu0 0.0
    %112 = vmatpush.msra.mxu0 0.0
    %113 = vmatpush.msra.mxu0 0.0
    %114 = vmatpush.msra.mxu0 0.0
    %115 = vmatpush.msra.mxu0 0.0
    %116 = vmatpush.msra.mxu0 0.0
    %117 = vmatpush.msra.mxu0 0.0
    %118 = vmatpush.msra.mxu0 0.0
    %119 = vmatpush.msra.mxu0 0.0
    %120 = vmatpush.msra.mxu0 0.0
    %121 = vmatpush.msra.mxu0 0.0
    %122 = vmatpush.msra.mxu0 0.0
    %123 = vmatpush.msra.mxu0 0.0
    %124 = vmatpush.msra.mxu0 0.0
    %125 = vmatpush.msra.mxu0 0.0
    %126 = vmatpush.msra.mxu0 %v109
    %127 = vmatmul.f32.gmra.mxu0 %v105
    %v128 = vpop.f32.mrf.mxu0
    %v129 = vadd.f32 0.0, %v128
    %130 = vdwg.mxu0
    %vm131 = vcmask 261120
    %v133 = vsel %vm131, %v97, 0
    %135 = vmatpush.msra.mxu0 0.0
    %136 = vmatpush.msra.mxu0 0.0
    %137 = vmatpush.msra.mxu0 0.0
    %138 = vmatpush.msra.mxu0 0.0
    %139 = vmatpush.msra.mxu0 0.0
    %140 = vmatpush.msra.mxu0 0.0
    %141 = vmatpush.msra.mxu0 0.0
    %142 = vmatpush.msra.mxu0 0.0
    %143 = vmatpush.msra.mxu0 0.0
    %144 = vmatpush.msra.mxu0 0.0
    %145 = vmatpush.msra.mxu0 0.0
    %146 = vmatpush.msra.mxu0 0.0
    %147 = vmatpush.msra.mxu0 %v101
    %148 = vmatpush.msra.mxu0 %v100
    %149 = vmatpush.msra.mxu0 %v99
    %150 = vmatpush.msra.mxu0 %v98
    %151 = vmatmul.f32.gmra.mxu0 %v133
    %v152 = vpop.f32.mrf.mxu0
    %v153 = vadd.f32 %v129, %v152
    %154 = vdwg.mxu0
    %v155 = vld [vmem:[%s6] sm:$0x1]
    %v157 = vperm.slane %v155, 0
    %v159 = vadd.f32 %v153, %v157
    %v160 = vmax.f32 %v159, 0.0
    %v161 = vld [vmem:[%s7] sm:$0x1]
    %v163 = vperm.slane %v161, 0
    %v165 = vmul.f32 %v160, %v163
    %v166 = vsel %vm131, %v165, 0.0
    %167 = vadd.xlane.f32.xlu0 %v166
    %v168 = vpop.xlane.xlu0 %167
    %s169 = sld [smem:[#allocation2]]
    %v170 = vstv %s169
    %v171 = vadd.f32 %v168, %v170
    %vm172 = vcmask 7168
    %173 = vst.msk [vmem:[%s9] sm:$0xff] %vm172, %v171
    // Predicated region
    $region46: #{tpu_custom_call.1} parent=1 // pred_check
      _
    $region47: #{tpu_custom_call.1} parent=1 // pred_check_branch
      %175 = sbr.rel (0) target = $region49
    $region48: #{tpu_custom_call.1} parent=1 // pred_region
      _
    $region49: #{tpu_custom_call.1} parent=1 // pred_fallthru
      _
    // Predicated region
    $region50: #{tpu_custom_call.1} parent=1 // pred_check
      _
    $region51: #{tpu_custom_call.1} parent=1 // pred_check_branch
      %177 = sbr.rel (0) target = $region53
    $region52: #{tpu_custom_call.1} parent=1 // pred_region
      _
    $region53: #{tpu_custom_call.1} parent=1 // pred_fallthru
      _
    %178 = vsyncpa [#allocation4], 1
    %179 = vsyncpa [#allocation6], 1

</llo_original>
